<compile_context>
chip_gen: v6e
topology: v6e:2x2x1
jax: 0.10.0
libtpu: 0.0.40
codegen_flags: <defaults>
</compile_context>

<pallas_src>
import functools

import jax
import jax.numpy as jnp
from jax.experimental import pallas as pl
from jax.experimental.pallas import tpu as pltpu


LANE = 128            # lane width: last dim of every tile padded to a multiple
SUBLANE = 8           # sublane tile (f32) for the batch dim
NEG_FILL = -100000000000.0   # AGEM masking constant (-1e11)


def _round_up(n, m):
    return ((n + m - 1) // m) * m


# ----------------------------- fused Pallas kernel --------------------------

def _fused_mlp_kernel(*refs, n_hidden_layers, offset1, offset2):
    """Single-kernel MLP forward + task-output masking.

    refs = (x, w0, b0, ..., w_{L-1}, b_{L-1}, w_head, b_head, out)
      x:      (M_pad, K_pad)   f32
      w_i:    (K_i_pad, H_pad) bf16   (zero padded, lane-dense)
      b_i:    (1, H_pad)       f32
      w_head: (H_pad, O_pad)   bf16
      b_head: (1, O_pad)       f32
      out:    (M_pad, O_pad)   f32    (lane-dense unmasked store)
    """
    x_ref = refs[0]
    o_ref = refs[-1]
    params = refs[1:-1]

    # bf16 x bf16 -> f32 on the MXU; VPU epilogues (bias/ReLU/mask) stay f32.
    h = x_ref[...].astype(jnp.bfloat16)
    for i in range(n_hidden_layers):
        w = params[2 * i][...]
        b = params[2 * i + 1][...]
        y = jnp.dot(h, w, preferred_element_type=jnp.float32) + b
        y = jnp.maximum(y, 0.0)
        h = y.astype(jnp.bfloat16)

    w = params[-2][...]
    b = params[-1][...]
    y = jnp.dot(h, w, preferred_element_type=jnp.float32) + b

    # Task masking fused into the head epilogue; padding columns (>= n_outputs)
    # land in the masked region and are sliced off by the wrapper.
    col = jax.lax.broadcasted_iota(jnp.int32, y.shape, dimension=1)
    y = jnp.where((col < offset1) | (col >= offset2), jnp.float32(NEG_FILL), y)
    o_ref[...] = y


# ----------------------------- wrapper --------------------------------------

_VMEM = pl.BlockSpec(memory_space=pltpu.MemorySpace.VMEM)


def fused_mlp_forward(x_flat, padded_params, *, offset1, offset2, n_outputs):
    """x_flat: (batch, K) f32.  padded_params: [(w_bf16, b_f32), ...] lane-padded.
    Returns (batch, n_outputs) f32."""
    batch, k_in = x_flat.shape
    m_pad = _round_up(max(batch, SUBLANE), SUBLANE)
    k_pad = padded_params[0][0].shape[0]
    o_pad = padded_params[-1][0].shape[1]

    x_p = jnp.zeros((m_pad, k_pad), jnp.float32).at[:batch, :k_in].set(x_flat)

    flat_args = [x_p]
    for (w, b) in padded_params:
        flat_args.append(w)
        flat_args.append(b)

    kernel = functools.partial(
        _fused_mlp_kernel,
        n_hidden_layers=len(padded_params) - 1,
        offset1=int(offset1),
        offset2=int(offset2),
    )
    # Whole problem fits in VMEM (weights ~256 KiB); no grid needed at these
    # shapes.  If the net is scaled up, add an M-parallel / K-arbitrary grid
    # with dimension_semantics and an f32 accumulator scratch (see review).
    out_pad = pl.pallas_call(
        kernel,
        out_shape=jax.ShapeDtypeStruct((m_pad, o_pad), jnp.float32),
        in_specs=[_VMEM] * len(flat_args),
        out_specs=_VMEM,
    )(*flat_args)
    return out_pad[:batch, :n_outputs]


# ----------------------------- params ---------------------------------------

def init_params(key, n_inputs, n_hiddens, n_layers, n_outputs):
    """Synthetic params for an MLP matching the AGEM `net`:
    flatten(3, n_inputs, n_inputs) -> [Linear(nh)+ReLU]*n_layers -> Linear(n_outputs)."""
    in_dim = 3 * n_inputs * n_inputs
    dims = [in_dim] + [n_hiddens] * n_layers + [n_outputs]
    params = []
    for i in range(len(dims) - 1):
        key, kw = jax.random.split(key)
        w = (jax.random.normal(kw, (dims[i], dims[i + 1]), jnp.float32)
             * (1.0 / jnp.sqrt(jnp.float32(dims[i]))))
        b = jnp.zeros((1, dims[i + 1]), jnp.float32)
        params.append((w, b))
    return params


def pad_params_for_tpu(params):
    """Zero-pad every weight/bias to lane-dense (128-multiple) feature widths,
    chaining the padded dims between layers; weights -> bf16, biases stay f32."""
    padded = []
    prev_pad = _round_up(params[0][0].shape[0], LANE)
    for (w, b) in params:
        k, n = w.shape
        k_pad = prev_pad
        n_pad = _round_up(n, LANE)
        w_p = (jnp.zeros((k_pad, n_pad), jnp.float32)
               .at[:k, :n].set(w).astype(jnp.bfloat16))
        b_p = jnp.zeros((1, n_pad), jnp.float32).at[:, :n].set(b)
        padded.append((w_p, b_p))
        prev_pad = n_pad
    return padded


# ----------------------------- Net.forward ----------------------------------

def net_forward(padded_params, x, t, nc_per_task, n_outputs):
    """Equivalent of Net.forward(x, t) for integer nc_per_task."""
    n = x.shape[0]
    h = x.reshape(n, -1).astype(jnp.float32)   # same as torch .view(N, -1)
    offset1 = int(t * nc_per_task)
    offset2 = min(int((t + 1) * nc_per_task), n_outputs)
    return fused_mlp_forward(h, padded_params, offset1=offset1,
                             offset2=offset2, n_outputs=n_outputs)
    # TODO(synk): list-valued args.n_classes branch (compute_offsets) is the same
    # fused kernel with different static offsets; not exercised here.


# ----------------------------- main ------------------------------------------

if __name__ == "__main__":
    # Small config consistent with the module:
    #   images 3 x 16 x 16, n_hiddens=32, n_layers=2, 2 tasks x 5 classes.
    batch = 2
    n_inputs = 16
    n_hiddens = 32
    n_layers = 2
    nc_per_task = 5
    n_tasks = 2
    n_outputs = nc_per_task * n_tasks
    t = 1

    key = jax.random.PRNGKey(0)
    key, kx = jax.random.split(key)
    x = jax.random.normal(kx, (batch, 3, n_inputs, n_inputs), jnp.float32)

    params = init_params(key, n_inputs, n_hiddens, n_layers, n_outputs)
    padded_params = pad_params_for_tpu(params)

    out = net_forward(padded_params, x, t, nc_per_task, n_outputs)
    out = jax.block_until_ready(out)

    assert out.shape == (batch, n_outputs)

    # masked regions hold exactly -1e11
    offset1 = t * nc_per_task
    offset2 = min((t + 1) * nc_per_task, n_outputs)
    assert bool(jnp.all(out[:, :offset1] == NEG_FILL))
    if offset2 < n_outputs:
        assert bool(jnp.all(out[:, offset2:] == NEG_FILL))

    # unmasked columns match a pure-JAX bf16-weight reference (padding is exact)
    def ref_forward(ps, xf):
        h = xf.astype(jnp.bfloat16)
        for (w, b) in ps[:-1]:
            y = jnp.dot(h, w.astype(jnp.bfloat16),
                        preferred_element_type=jnp.float32) + b
            h = jnp.maximum(y, 0.0).astype(jnp.bfloat16)
        w, b = ps[-1]
        return jnp.dot(h, w.astype(jnp.bfloat16),
                       preferred_element_type=jnp.float32) + b

    ref = ref_forward(params, x.reshape(batch, -1))
    assert bool(jnp.allclose(out[:, offset1:offset2], ref[:, offset1:offset2],
                             rtol=5e-2, atol=5e-2))

    print("KERNEL_OK")
</pallas_src>

<mosaic_0001>
module attributes {stable_mosaic.version = 11 : i64} {
  func.func @_fused_mlp_kernel(%arg0: memref<8x768xf32, #tpu.memory_space<vmem>>, %arg1: memref<768x128xbf16, #tpu.memory_space<vmem>>, %arg2: memref<1x128xf32, #tpu.memory_space<vmem>>, %arg3: memref<128x128xbf16, #tpu.memory_space<vmem>>, %arg4: memref<1x128xf32, #tpu.memory_space<vmem>>, %arg5: memref<128x128xbf16, #tpu.memory_space<vmem>>, %arg6: memref<1x128xf32, #tpu.memory_space<vmem>>, %arg7: memref<8x128xf32, #tpu.memory_space<vmem>>) attributes {dimension_semantics = [], scalar_prefetch = 0 : i64, scratch_operands = 0 : i64, tpu.core_type = #tpu.core_type<tc>} {
    %c0 = arith.constant 0 : index
    %c0_0 = arith.constant 0 : index
    %0 = vector.load %arg0[%c0, %c0_0] : memref<8x768xf32, #tpu.memory_space<vmem>>, vector<8x768xf32>
    %1 = arith.truncf %0 : vector<8x768xf32> to vector<8x768xbf16>
    %c0_1 = arith.constant 0 : index
    %c0_2 = arith.constant 0 : index
    %2 = vector.load %arg1[%c0_1, %c0_2] : memref<768x128xbf16, #tpu.memory_space<vmem>>, vector<768x128xbf16>
    %c0_3 = arith.constant 0 : index
    %c0_4 = arith.constant 0 : index
    %3 = vector.load %arg2[%c0_3, %c0_4] : memref<1x128xf32, #tpu.memory_space<vmem>>, vector<1x128xf32>
    %cst = arith.constant dense<0.000000e+00> : vector<8x128xf32>
    %4 = tpu.matmul %1, %2, %cst {dimension_numbers = #tpu.dot_dimension_numbers<[1], [0], [0], [1], [0, 0, 1, 1], [], []>} : vector<8x768xbf16>, vector<768x128xbf16>, vector<8x128xf32> -> vector<8x128xf32>
    %5 = vector.broadcast %3 : vector<1x128xf32> to vector<8x128xf32>
    %6 = arith.addf %4, %5 : vector<8x128xf32>
    %cst_5 = arith.constant 0.000000e+00 : f32
    %7 = vector.broadcast %cst_5 : f32 to vector<8x128xf32>
    %8 = arith.maximumf %6, %7 : vector<8x128xf32>
    %9 = arith.truncf %8 : vector<8x128xf32> to vector<8x128xbf16>
    %c0_6 = arith.constant 0 : index
    %c0_7 = arith.constant 0 : index
    %10 = vector.load %arg3[%c0_6, %c0_7] : memref<128x128xbf16, #tpu.memory_space<vmem>>, vector<128x128xbf16>
    %c0_8 = arith.constant 0 : index
    %c0_9 = arith.constant 0 : index
    %11 = vector.load %arg4[%c0_8, %c0_9] : memref<1x128xf32, #tpu.memory_space<vmem>>, vector<1x128xf32>
    %cst_10 = arith.constant dense<0.000000e+00> : vector<8x128xf32>
    %12 = tpu.matmul %9, %10, %cst_10 {dimension_numbers = #tpu.dot_dimension_numbers<[1], [0], [0], [1], [0, 0, 1, 1], [], []>} : vector<8x128xbf16>, vector<128x128xbf16>, vector<8x128xf32> -> vector<8x128xf32>
    %13 = vector.broadcast %11 : vector<1x128xf32> to vector<8x128xf32>
    %14 = arith.addf %12, %13 : vector<8x128xf32>
    %cst_11 = arith.constant 0.000000e+00 : f32
    %15 = vector.broadcast %cst_11 : f32 to vector<8x128xf32>
    %16 = arith.maximumf %14, %15 : vector<8x128xf32>
    %17 = arith.truncf %16 : vector<8x128xf32> to vector<8x128xbf16>
    %c0_12 = arith.constant 0 : index
    %c0_13 = arith.constant 0 : index
    %18 = vector.load %arg5[%c0_12, %c0_13] : memref<128x128xbf16, #tpu.memory_space<vmem>>, vector<128x128xbf16>
    %c0_14 = arith.constant 0 : index
    %c0_15 = arith.constant 0 : index
    %19 = vector.load %arg6[%c0_14, %c0_15] : memref<1x128xf32, #tpu.memory_space<vmem>>, vector<1x128xf32>
    %cst_16 = arith.constant dense<0.000000e+00> : vector<8x128xf32>
    %20 = tpu.matmul %17, %18, %cst_16 {dimension_numbers = #tpu.dot_dimension_numbers<[1], [0], [0], [1], [0, 0, 1, 1], [], []>} : vector<8x128xbf16>, vector<128x128xbf16>, vector<8x128xf32> -> vector<8x128xf32>
    %21 = vector.broadcast %19 : vector<1x128xf32> to vector<8x128xf32>
    %22 = arith.addf %20, %21 : vector<8x128xf32>
    %23 = tpu.iota {dimensions = array<i32: 1>} : vector<8x128xi32>
    %c5_i32 = arith.constant 5 : i32
    %24 = vector.broadcast %c5_i32 : i32 to vector<8x128xi32>
    %25 = arith.cmpi slt, %23, %24 : vector<8x128xi32>
    %c10_i32 = arith.constant 10 : i32
    %26 = vector.broadcast %c10_i32 : i32 to vector<8x128xi32>
    %27 = arith.cmpi sge, %23, %26 : vector<8x128xi32>
    %28 = arith.ori %25, %27 : vector<8x128xi1>
    %cst_17 = arith.constant -9.99999979E+10 : f32
    %29 = vector.broadcast %cst_17 : f32 to vector<8x128xf32>
    %30 = arith.select %28, %29, %22 : vector<8x128xi1>, vector<8x128xf32>
    %c0_18 = arith.constant 0 : index
    %c0_19 = arith.constant 0 : index
    %31 = vector.load %arg7[%c0_18, %c0_19] : memref<8x128xf32, #tpu.memory_space<vmem>>, vector<8x128xf32>
    tpu.vector_store %arg7[%c0_18, %c0_19], %30 {strides = array<i32>} : memref<8x128xf32, #tpu.memory_space<vmem>>, vector<8x128xf32>,
    return
  }
}

</mosaic_0001>

<llo_original>
// kernel: tpu_custom_call.1
$region0: #{tpu_custom_call.1}
  #allocation0 [shape = 'u32[]', space=smem, size = 0x4, offset = 0x4, fixed_abs, tag = 'smem constant byte address 0x4 - core index']
  #allocation1 [shape = 'u32[144,128]{1,0:T(1,128)}', space=vmem, size = 0x12000, scoped, tag = 'internal scratch']
  %s0 = inlined_call_operand.hbm [shape: f32[8,768], index: 0, kind: input, shape index: {}]
  %s1 = inlined_call_operand.hbm [shape: bf16[768,128], index: 1, kind: input, shape index: {}]
  %s2 = inlined_call_operand.vmem [shape: f32[1,128], index: 2, kind: input, shape index: {}]
  %s3 = inlined_call_operand.hbm [shape: bf16[128,128], index: 3, kind: input, shape index: {}]
  %s4 = inlined_call_operand.vmem [shape: f32[1,128], index: 4, kind: input, shape index: {}]
  %s5 = inlined_call_operand.hbm [shape: bf16[128,128], index: 5, kind: input, shape index: {}]
  %s6 = inlined_call_operand.vmem [shape: f32[1,128], index: 6, kind: input, shape index: {}]
  %s7 = inlined_call_operand.hbm [shape: f32[8,128], index: 7, kind: output, shape index: {}]
  %s8 = sld [smem:[#allocation0]]
  $region54: #{tpu_custom_call.1} parent=0
    _
  %s10 = ssub.s32 1, %s8
  %s11 = scalar_select 0, %s10, %s8
  $region1: #{tpu_custom_call.1} parent=0
    #allocation2 [shape = 'u8[24576]{0}', space=vmem, size = 0x6000, scoped, tag = 'input window, operand 0, single buffered']
    #allocation3 [shape = 's32[1]{0}', space=sflag, size = 0x4, scoped, tag = 'scoped memory for tpu_custom_call.1']
    #allocation4 [shape = 's32[1]{0}', space=sflag, size = 0x4, scoped, tag = 'scoped memory for tpu_custom_call.1']
    #allocation5 [shape = 'u8[196608]{0}', space=vmem, size = 0x30000, scoped, tag = 'input window, operand 1, single buffered']
    #allocation6 [shape = 's32[1]{0}', space=sflag, size = 0x4, scoped, tag = 'scoped memory for tpu_custom_call.1']
    #allocation7 [shape = 'u8[32768]{0}', space=vmem, size = 0x8000, scoped, tag = 'input window, operand 3, single buffered']
    #allocation8 [shape = 'u8[32768]{0}', space=vmem, size = 0x8000, scoped, tag = 'input window, operand 5, single buffered']
    #allocation9 [shape = 's32[1]{0}', space=sflag, size = 0x4, scoped, tag = 'scoped memory for tpu_custom_call.1']
    #allocation10 [shape = 'u8[4096]{0}', space=vmem, size = 0x1000, scoped, tag = 'output window, operand 0, single buffered']
    %12 = vsyncpa [#allocation3], 0
    %13 = vsyncpa [#allocation6], 0
    %14 = vsyncpa [#allocation9], 0
    %15 = vsyncpa [#allocation4], 0
    // Predicated region
    $region2: #{tpu_custom_call.1} parent=1 // pred_check
      _
    $region3: #{tpu_custom_call.1} parent=1 // pred_check_branch
      %17 = sbr.rel (0) target = $region5
    $region4: #{tpu_custom_call.1} parent=1 // pred_region
      %s19 = ssub.s32 768, 768
      %20 = vsyncadd [#allocation3], %s19
      %s22 = sshll.u32 [#allocation2], 4
      %s23 = int_to_ptr.vmem [resolvable:$true] %s22
      %25 = dma.hbm_to_vmem [thread:$0]  %s0, 768, %s23, [#allocation3]
    $region5: #{tpu_custom_call.1} parent=1 // pred_fallthru
      _
    // Predicated region
    $region6: #{tpu_custom_call.1} parent=1 // pred_check
      _
    $region7: #{tpu_custom_call.1} parent=1 // pred_check_branch
      %27 = sbr.rel (0) target = $region9
    $region8: #{tpu_custom_call.1} parent=1 // pred_region
      %s29 = ssub.s32 6144, 6144
      %30 = vsyncadd [#allocation6], %s29
      %s31 = sshll.u32 [#allocation5], 4
      %s32 = int_to_ptr.vmem [resolvable:$true] %s31
      %37 = dma.hbm_to_vmem [thread:$0]  %s1, 6144, %s32, [#allocation6], 64, 64, 4
    $region9: #{tpu_custom_call.1} parent=1 // pred_fallthru
      _
    // Predicated region
    $region10: #{tpu_custom_call.1} parent=1 // pred_check
      _
    $region11: #{tpu_custom_call.1} parent=1 // pred_check_branch
      %39 = sbr.rel (0) target = $region13
    $region12: #{tpu_custom_call.1} parent=1 // pred_region
      _
    $region13: #{tpu_custom_call.1} parent=1 // pred_fallthru
      _
    // Predicated region
    $region14: #{tpu_custom_call.1} parent=1 // pred_check
      _
    $region15: #{tpu_custom_call.1} parent=1 // pred_check_branch
      %41 = sbr.rel (0) target = $region17
    $region16: #{tpu_custom_call.1} parent=1 // pred_region
      %s43 = ssub.s32 1024, 1024
      %44 = vsyncadd [#allocation6], %s43
      %s45 = sshll.u32 [#allocation7], 4
      %s46 = int_to_ptr.vmem [resolvable:$true] %s45
      %51 = dma.hbm_to_vmem [thread:$0]  %s3, 1024, %s46, [#allocation6], 64, 64, 4
    $region17: #{tpu_custom_call.1} parent=1 // pred_fallthru
      _
    // Predicated region
    $region18: #{tpu_custom_call.1} parent=1 // pred_check
      _
    $region19: #{tpu_custom_call.1} parent=1 // pred_check_branch
      %53 = sbr.rel (0) target = $region21
    $region20: #{tpu_custom_call.1} parent=1 // pred_region
      _
    $region21: #{tpu_custom_call.1} parent=1 // pred_fallthru
      _
    // Predicated region
    $region22: #{tpu_custom_call.1} parent=1 // pred_check
      _
    $region23: #{tpu_custom_call.1} parent=1 // pred_check_branch
      %55 = sbr.rel (0) target = $region25
    $region24: #{tpu_custom_call.1} parent=1 // pred_region
      %s57 = ssub.s32 1024, 1024
      %58 = vsyncadd [#allocation9], %s57
      %s59 = sshll.u32 [#allocation8], 4
      %s60 = int_to_ptr.vmem [resolvable:$true] %s59
      %65 = dma.hbm_to_vmem [thread:$0]  %s5, 1024, %s60, [#allocation9], 64, 64, 4
    $region25: #{tpu_custom_call.1} parent=1 // pred_fallthru
      _
    // Predicated region
    $region26: #{tpu_custom_call.1} parent=1 // pred_check
      _
    $region27: #{tpu_custom_call.1} parent=1 // pred_check_branch
      %67 = sbr.rel (0) target = $region29
    $region28: #{tpu_custom_call.1} parent=1 // pred_region
      _
    $region29: #{tpu_custom_call.1} parent=1 // pred_fallthru
      _
    // Predicated region
    $region30: #{tpu_custom_call.1} parent=1 // pred_check
      _
    $region31: #{tpu_custom_call.1} parent=1 // pred_check_branch
      %69 = sbr.rel (0) target = $region33
    $region32: #{tpu_custom_call.1} parent=1 // pred_region
      %70 = dma.done [#allocation3], 768
    $region33: #{tpu_custom_call.1} parent=1 // pred_fallthru
      _
    // Predicated region
    $region34: #{tpu_custom_call.1} parent=1 // pred_check
      _
    $region35: #{tpu_custom_call.1} parent=1 // pred_check_branch
      %72 = sbr.rel (0) target = $region37
    $region36: #{tpu_custom_call.1} parent=1 // pred_region
      %73 = dma.done [#allocation6], 6144
    $region37: #{tpu_custom_call.1} parent=1 // pred_fallthru
      _
    // Predicated region
    $region38: #{tpu_custom_call.1} parent=1 // pred_check
      _
    $region39: #{tpu_custom_call.1} parent=1 // pred_check_branch
      %75 = sbr.rel (0) target = $region41
    $region40: #{tpu_custom_call.1} parent=1 // pred_region
      %76 = dma.done [#allocation6], 1024
    $region41: #{tpu_custom_call.1} parent=1 // pred_fallthru
      _
    // Predicated region
    $region42: #{tpu_custom_call.1} parent=1 // pred_check
      _
    $region43: #{tpu_custom_call.1} parent=1 // pred_check_branch
      %78 = sbr.rel (0) target = $region45
    $region44: #{tpu_custom_call.1} parent=1 // pred_region
      %79 = dma.done [#allocation9], 1024
    $region45: #{tpu_custom_call.1} parent=1 // pred_fallthru
      _
    %v81 = vld [vmem:[#allocation2] sm:$0xff]
    %v82 = vld [vmem:[#allocation2 + $0x8] sm:$0xff]
    %v83 = vld [vmem:[#allocation2 + $0x10] sm:$0xff]
    %v84 = vld [vmem:[#allocation2 + $0x18] sm:$0xff]
    %v85 = vld [vmem:[#allocation2 + $0x20] sm:$0xff]
    %v86 = vld [vmem:[#allocation2 + $0x28] sm:$0xff]
    %v87 = vpack.c.bf16 %v81, %v81
    %v88 = vpack.c.bf16 %v82, %v82
    %v89 = vpack.c.bf16 %v83, %v83
    %v90 = vpack.c.bf16 %v84, %v84
    %v91 = vpack.c.bf16 %v85, %v85
    %v92 = vpack.c.bf16 %v86, %v86
    %v93 = vld [vmem:[#allocation5] sm:$0xf]
    %v94 = vld [vmem:[#allocation5 + $0x4] sm:$0xf]
    %v95 = vld [vmem:[#allocation5 + $0x8] sm:$0xf]
    %v96 = vld [vmem:[#allocation5 + $0xc] sm:$0xf]
    %v97 = vld [vmem:[#allocation5 + $0x10] sm:$0xf]
    %v98 = vld [vmem:[#allocation5 + $0x14] sm:$0xf]
    %v99 = vld [vmem:[#allocation5 + $0x18] sm:$0xf]
    %v100 = vld [vmem:[#allocation5 + $0x1c] sm:$0xf]
    %v101 = vld [vmem:[#allocation5 + $0x20] sm:$0xf]
    %v102 = vld [vmem:[#allocation5 + $0x24] sm:$0xf]
    %v103 = vld [vmem:[#allocation5 + $0x28] sm:$0xf]
    %v104 = vld [vmem:[#allocation5 + $0x2c] sm:$0xf]
    %v105 = vld [vmem:[#allocation5 + $0x30] sm:$0xf]
    %v106 = vld [vmem:[#allocation5 + $0x34] sm:$0xf]
    %v107 = vld [vmem:[#allocation5 + $0x38] sm:$0xf]
    %v108 = vld [vmem:[#allocation5 + $0x3c] sm:$0xf]
    %v109 = vld [vmem:[#allocation5 + $0x40] sm:$0xf]
    %v110 = vld [vmem:[#allocation5 + $0x44] sm:$0xf]
    %v111 = vld [vmem:[#allocation5 + $0x48] sm:$0xf]
    %v112 = vld [vmem:[#allocation5 + $0x4c] sm:$0xf]
    %v113 = vld [vmem:[#allocation5 + $0x50] sm:$0xf]
    %v114 = vld [vmem:[#allocation5 + $0x54] sm:$0xf]
    %v115 = vld [vmem:[#allocation5 + $0x58] sm:$0xf]
    %v116 = vld [vmem:[#allocation5 + $0x5c] sm:$0xf]
    %v117 = vld [vmem:[#allocation5 + $0x60] sm:$0xf]
    %v118 = vld [vmem:[#allocation5 + $0x64] sm:$0xf]
    %v119 = vld [vmem:[#allocation5 + $0x68] sm:$0xf]
    %v120 = vld [vmem:[#allocation5 + $0x6c] sm:$0xf]
    %v121 = vld [vmem:[#allocation5 + $0x70] sm:$0xf]
    %v122 = vld [vmem:[#allocation5 + $0x74] sm:$0xf]
    %v123 = vld [vmem:[#allocation5 + $0x78] sm:$0xf]
    %v124 = vld [vmem:[#allocation5 + $0x7c] sm:$0xf]
    %v125 = vld [vmem:[#allocation5 + $0x80] sm:$0xf]
    %v126 = vld [vmem:[#allocation5 + $0x84] sm:$0xf]
    %v127 = vld [vmem:[#allocation5 + $0x88] sm:$0xf]
    %v128 = vld [vmem:[#allocation5 + $0x8c] sm:$0xf]
    %v129 = vld [vmem:[#allocation5 + $0x90] sm:$0xf]
    %v130 = vld [vmem:[#allocation5 + $0x94] sm:$0xf]
    %v131 = vld [vmem:[#allocation5 + $0x98] sm:$0xf]
    %v132 = vld [vmem:[#allocation5 + $0x9c] sm:$0xf]
    %v133 = vld [vmem:[#allocation5 + $0xa0] sm:$0xf]
    %v134 = vld [vmem:[#allocation5 + $0xa4] sm:$0xf]
    %v135 = vld [vmem:[#allocation5 + $0xa8] sm:$0xf]
    %v136 = vld [vmem:[#allocation5 + $0xac] sm:$0xf]
    %v137 = vld [vmem:[#allocation5 + $0xb0] sm:$0xf]
    %v138 = vld [vmem:[#allocation5 + $0xb4] sm:$0xf]
    %v139 = vld [vmem:[#allocation5 + $0xb8] sm:$0xf]
    %v140 = vld [vmem:[#allocation5 + $0xbc] sm:$0xf]
    %v141 = vld [vmem:[#allocation5 + $0xc0] sm:$0xf]
    %v142 = vld [vmem:[#allocation5 + $0xc4] sm:$0xf]
    %v143 = vld [vmem:[#allocation5 + $0xc8] sm:$0xf]
    %v144 = vld [vmem:[#allocation5 + $0xcc] sm:$0xf]
    %v145 = vld [vmem:[#allocation5 + $0xd0] sm:$0xf]
    %v146 = vld [vmem:[#allocation5 + $0xd4] sm:$0xf]
    %v147 = vld [vmem:[#allocation5 + $0xd8] sm:$0xf]
    %v148 = vld [vmem:[#allocation5 + $0xdc] sm:$0xf]
    %v149 = vld [vmem:[#allocation5 + $0xe0] sm:$0xf]
    %v150 = vld [vmem:[#allocation5 + $0xe4] sm:$0xf]
    %v151 = vld [vmem:[#allocation5 + $0xe8] sm:$0xf]
    %v152 = vld [vmem:[#allocation5 + $0xec] sm:$0xf]
    %v153 = vld [vmem:[#allocation5 + $0xf0] sm:$0xf]
    %v154 = vld [vmem:[#allocation5 + $0xf4] sm:$0xf]
    %v155 = vld [vmem:[#allocation5 + $0xf8] sm:$0xf]
    %v156 = vld [vmem:[#allocation5 + $0xfc] sm:$0xf]
    %v157 = vld [vmem:[#allocation5 + $0x100] sm:$0xf]
    %v158 = vld [vmem:[#allocation5 + $0x104] sm:$0xf]
    %v159 = vld [vmem:[#allocation5 + $0x108] sm:$0xf]
    %v160 = vld [vmem:[#allocation5 + $0x10c] sm:$0xf]
    %v161 = vld [vmem:[#allocation5 + $0x110] sm:$0xf]
    %v162 = vld [vmem:[#allocation5 + $0x114] sm:$0xf]
    %v163 = vld [vmem:[#allocation5 + $0x118] sm:$0xf]
    %v164 = vld [vmem:[#allocation5 + $0x11c] sm:$0xf]
    %v165 = vld [vmem:[#allocation5 + $0x120] sm:$0xf]
    %v166 = vld [vmem:[#allocation5 + $0x124] sm:$0xf]
    %v167 = vld [vmem:[#allocation5 + $0x128] sm:$0xf]
    %v168 = vld [vmem:[#allocation5 + $0x12c] sm:$0xf]
    %v169 = vld [vmem:[#allocation5 + $0x130] sm:$0xf]
    %v170 = vld [vmem:[#allocation5 + $0x134] sm:$0xf]
    %v171 = vld [vmem:[#allocation5 + $0x138] sm:$0xf]
    %v172 = vld [vmem:[#allocation5 + $0x13c] sm:$0xf]
    %v173 = vld [vmem:[#allocation5 + $0x140] sm:$0xf]
    %v174 = vld [vmem:[#allocation5 + $0x144] sm:$0xf]
    %v175 = vld [vmem:[#allocation5 + $0x148] sm:$0xf]
    %v176 = vld [vmem:[#allocation5 + $0x14c] sm:$0xf]
    %v177 = vld [vmem:[#allocation5 + $0x150] sm:$0xf]
    %v178 = vld [vmem:[#allocation5 + $0x154] sm:$0xf]
    %v179 = vld [vmem:[#allocation5 + $0x158] sm:$0xf]
    %v180 = vld [vmem:[#allocation5 + $0x15c] sm:$0xf]
    %v181 = vld [vmem:[#allocation5 + $0x160] sm:$0xf]
    %v182 = vld [vmem:[#allocation5 + $0x164] sm:$0xf]
    %v183 = vld [vmem:[#allocation5 + $0x168] sm:$0xf]
    %v184 = vld [vmem:[#allocation5 + $0x16c] sm:$0xf]
    %v185 = vld [vmem:[#allocation5 + $0x170] sm:$0xf]
    %v186 = vld [vmem:[#allocation5 + $0x174] sm:$0xf]
    %v187 = vld [vmem:[#allocation5 + $0x178] sm:$0xf]
    %v188 = vld [vmem:[#allocation5 + $0x17c] sm:$0xf]
    %v189 = vld [vmem:[%s2] sm:$0x1]
    %v191 = vlaneseq
    %v192 = vshrl.u32 %v191, 7
    %v193 = vsub.s32 0, %v192
    %v194 = vrot.slane %v189, %v193
    %v292 = vunpack.c.l.b16 %v93
    %v293 = vunpack.c.l.b16 %v94
    %v294 = vunpack.c.l.b16 %v95
    %v295 = vunpack.c.l.b16 %v96
    %v296 = vunpack.c.l.b16 %v97
    %v297 = vunpack.c.l.b16 %v98
    %v298 = vunpack.c.l.b16 %v99
    %v299 = vunpack.c.l.b16 %v100
    %v300 = vunpack.c.l.b16 %v101
    %v301 = vunpack.c.l.b16 %v102
    %v302 = vunpack.c.l.b16 %v103
    %v303 = vunpack.c.l.b16 %v104
    %v304 = vunpack.c.l.b16 %v105
    %v305 = vunpack.c.l.b16 %v106
    %v306 = vunpack.c.l.b16 %v107
    %v307 = vunpack.c.l.b16 %v108
    %v308 = vunpack.c.l.b16 %v109
    %v309 = vunpack.c.l.b16 %v110
    %v310 = vunpack.c.l.b16 %v111
    %v311 = vunpack.c.l.b16 %v112
    %v312 = vunpack.c.l.b16 %v113
    %v313 = vunpack.c.l.b16 %v114
    %v314 = vunpack.c.l.b16 %v115
    %v315 = vunpack.c.l.b16 %v116
    %v316 = vunpack.c.l.b16 %v117
    %v317 = vunpack.c.l.b16 %v118
    %v318 = vunpack.c.l.b16 %v119
    %v319 = vunpack.c.l.b16 %v120
    %v320 = vunpack.c.l.b16 %v121
    %v321 = vunpack.c.l.b16 %v122
    %v322 = vunpack.c.l.b16 %v123
    %v323 = vunpack.c.l.b16 %v124
    %v324 = vunpack.c.l.b16 %v125
    %v325 = vunpack.c.l.b16 %v126
    %v326 = vunpack.c.l.b16 %v127
    %v327 = vunpack.c.l.b16 %v128
    %v328 = vunpack.c.l.b16 %v129
    %v329 = vunpack.c.l.b16 %v130
    %v330 = vunpack.c.l.b16 %v131
    %v331 = vunpack.c.l.b16 %v132
    %v332 = vunpack.c.l.b16 %v133
    %v333 = vunpack.c.l.b16 %v134
    %v334 = vunpack.c.l.b16 %v135
    %v335 = vunpack.c.l.b16 %v136
    %v336 = vunpack.c.l.b16 %v137
    %v337 = vunpack.c.l.b16 %v138
    %v338 = vunpack.c.l.b16 %v139
    %v339 = vunpack.c.l.b16 %v140
    %v340 = vunpack.c.l.b16 %v141
    %v341 = vunpack.c.l.b16 %v142
    %v342 = vunpack.c.l.b16 %v143
    %v343 = vunpack.c.l.b16 %v144
    %v344 = vunpack.c.l.b16 %v145
    %v345 = vunpack.c.l.b16 %v146
    %v346 = vunpack.c.l.b16 %v147
    %v347 = vunpack.c.l.b16 %v148
    %v348 = vunpack.c.l.b16 %v149
    %v349 = vunpack.c.l.b16 %v150
    %v350 = vunpack.c.l.b16 %v151
    %v351 = vunpack.c.l.b16 %v152
    %v352 = vunpack.c.l.b16 %v153
    %v353 = vunpack.c.l.b16 %v154
    %v354 = vunpack.c.l.b16 %v155
    %v355 = vunpack.c.l.b16 %v156
    %v356 = vunpack.c.l.b16 %v157
    %v357 = vunpack.c.l.b16 %v158
    %v358 = vunpack.c.l.b16 %v159
    %v359 = vunpack.c.l.b16 %v160
    %v360 = vunpack.c.l.b16 %v161
    %v361 = vunpack.c.l.b16 %v162
    %v362 = vunpack.c.l.b16 %v163
    %v363 = vunpack.c.l.b16 %v164
    %v364 = vunpack.c.l.b16 %v165
    %v365 = vunpack.c.l.b16 %v166
    %v366 = vunpack.c.l.b16 %v167
    %v367 = vunpack.c.l.b16 %v168
    %v368 = vunpack.c.l.b16 %v169
    %v369 = vunpack.c.l.b16 %v170
    %v370 = vunpack.c.l.b16 %v171
    %v371 = vunpack.c.l.b16 %v172
    %v372 = vunpack.c.l.b16 %v173
    %v373 = vunpack.c.l.b16 %v174
    %v374 = vunpack.c.l.b16 %v175
    %v375 = vunpack.c.l.b16 %v176
    %v376 = vunpack.c.l.b16 %v177
    %v377 = vunpack.c.l.b16 %v178
    %v378 = vunpack.c.l.b16 %v179
    %v379 = vunpack.c.l.b16 %v180
    %v380 = vunpack.c.l.b16 %v181
    %v381 = vunpack.c.l.b16 %v182
    %v382 = vunpack.c.l.b16 %v183
    %v383 = vunpack.c.l.b16 %v184
    %v384 = vunpack.c.l.b16 %v185
    %v385 = vunpack.c.l.b16 %v186
    %v386 = vunpack.c.l.b16 %v187
    %v387 = vunpack.c.l.b16 %v188
    %v388 = vpack.c.b16 %v293, %v292
    %v389 = vpack.c.b16 %v295, %v294
    %v390 = vpack.c.b16 %v297, %v296
    %v391 = vpack.c.b16 %v299, %v298
    %v392 = vpack.c.b16 %v301, %v300
    %v393 = vpack.c.b16 %v303, %v302
    %v394 = vpack.c.b16 %v305, %v304
    %v395 = vpack.c.b16 %v307, %v306
    %v396 = vpack.c.b16 %v309, %v308
    %v397 = vpack.c.b16 %v311, %v310
    %v398 = vpack.c.b16 %v313, %v312
    %v399 = vpack.c.b16 %v315, %v314
    %v400 = vpack.c.b16 %v317, %v316
    %v401 = vpack.c.b16 %v319, %v318
    %v402 = vpack.c.b16 %v321, %v320
    %v403 = vpack.c.b16 %v323, %v322
    %v404 = vpack.c.b16 %v325, %v324
    %v405 = vpack.c.b16 %v327, %v326
    %v406 = vpack.c.b16 %v329, %v328
    %v407 = vpack.c.b16 %v331, %v330
    %v408 = vpack.c.b16 %v333, %v332
    %v409 = vpack.c.b16 %v335, %v334
    %v410 = vpack.c.b16 %v337, %v336
    %v411 = vpack.c.b16 %v339, %v338
    %v412 = vpack.c.b16 %v341, %v340
    %v413 = vpack.c.b16 %v343, %v342
    %v414 = vpack.c.b16 %v345, %v344
    %v415 = vpack.c.b16 %v347, %v346
    %v416 = vpack.c.b16 %v349, %v348
    %v417 = vpack.c.b16 %v351, %v350
    %v418 = vpack.c.b16 %v353, %v352
    %v419 = vpack.c.b16 %v355, %v354
    %v420 = vpack.c.b16 %v357, %v356
    %v421 = vpack.c.b16 %v359, %v358
    %v422 = vpack.c.b16 %v361, %v360
    %v423 = vpack.c.b16 %v363, %v362
    %v424 = vpack.c.b16 %v365, %v364
    %v425 = vpack.c.b16 %v367, %v366
    %v426 = vpack.c.b16 %v369, %v368
    %v427 = vpack.c.b16 %v371, %v370
    %v428 = vpack.c.b16 %v373, %v372
    %v429 = vpack.c.b16 %v375, %v374
    %v430 = vpack.c.b16 %v377, %v376
    %v431 = vpack.c.b16 %v379, %v378
    %v432 = vpack.c.b16 %v381, %v380
    %v433 = vpack.c.b16 %v383, %v382
    %v434 = vpack.c.b16 %v385, %v384
    %v435 = vpack.c.b16 %v387, %v386
    %484 = vmatprep.subr.bf16.mxu0 0
    %485 = vmatpush1.bf16.msra.mxu0 %v395
    %486 = vmatprep.subr.bf16.mxu0 0
    %487 = vmatpush1.bf16.msra.mxu0 %v394
    %488 = vmatprep.subr.bf16.mxu0 0
    %489 = vmatpush1.bf16.msra.mxu0 %v393
    %490 = vmatprep.subr.bf16.mxu0 0
    %491 = vmatpush1.bf16.msra.mxu0 %v392
    %492 = vmatprep.subr.bf16.mxu0 0
    %493 = vmatpush1.bf16.msra.mxu0 %v391
    %494 = vmatprep.subr.bf16.mxu0 0
    %495 = vmatpush1.bf16.msra.mxu0 %v390
    %496 = vmatprep.subr.bf16.mxu0 0
    %497 = vmatpush1.bf16.msra.mxu0 %v389
    %498 = vmatprep.subr.bf16.mxu0 0
    %499 = vmatpush1.bf16.msra.mxu0 %v388
    %500 = vmatprep.subr.bf16.mxu0 0
    %501 = vmatpush2.bf16.msra.mxu0 %v403
    %502 = vmatprep.subr.bf16.mxu0 0
    %503 = vmatpush2.bf16.msra.mxu0 %v402
    %504 = vmatprep.subr.bf16.mxu0 0
    %505 = vmatpush2.bf16.msra.mxu0 %v401
    %506 = vmatprep.subr.bf16.mxu0 0
    %507 = vmatpush2.bf16.msra.mxu0 %v400
    %508 = vmatprep.subr.bf16.mxu0 0
    %509 = vmatpush2.bf16.msra.mxu0 %v399
    %510 = vmatprep.subr.bf16.mxu0 0
    %511 = vmatpush2.bf16.msra.mxu0 %v398
    %512 = vmatprep.subr.bf16.mxu0 0
    %513 = vmatpush2.bf16.msra.mxu0 %v397
    %514 = vmatprep.subr.bf16.mxu0 0
    %515 = vmatpush2.bf16.msra.mxu0 %v396
    %516 = vmatprep.mubr.bf16.mxu0 %v88
    %517 = vmatmul.mubr.bf16.gmra.mxu0 %v87
    %v518 = vpop.f32.mrf.mxu0
    %v519 = vadd.f32 %v194, %v518
    %v520 = vpop.f32.mrf.mxu0
    %v521 = vpop.f32.mrf.mxu0
    %v522 = vpop.f32.mrf.mxu0
    %523 = vdwg.mxu0
    %524 = vmatprep.subr.bf16.mxu0 0
    %525 = vmatpush1.bf16.msra.mxu0 %v411
    %526 = vmatprep.subr.bf16.mxu0 0
    %527 = vmatpush1.bf16.msra.mxu0 %v410
    %528 = vmatprep.subr.bf16.mxu0 0
    %529 = vmatpush1.bf16.msra.mxu0 %v409
    %530 = vmatprep.subr.bf16.mxu0 0
    %531 = vmatpush1.bf16.msra.mxu0 %v408
    %532 = vmatprep.subr.bf16.mxu0 0
    %533 = vmatpush1.bf16.msra.mxu0 %v407
    %534 = vmatprep.subr.bf16.mxu0 0
    %535 = vmatpush1.bf16.msra.mxu0 %v406
    %536 = vmatprep.subr.bf16.mxu0 0
    %537 = vmatpush1.bf16.msra.mxu0 %v405
    %538 = vmatprep.subr.bf16.mxu0 0
    %539 = vmatpush1.bf16.msra.mxu0 %v404
    %540 = vmatprep.subr.bf16.mxu0 0
    %541 = vmatpush2.bf16.msra.mxu0 %v419
    %542 = vmatprep.subr.bf16.mxu0 0
    %543 = vmatpush2.bf16.msra.mxu0 %v418
    %544 = vmatprep.subr.bf16.mxu0 0
    %545 = vmatpush2.bf16.msra.mxu0 %v417
    %546 = vmatprep.subr.bf16.mxu0 0
    %547 = vmatpush2.bf16.msra.mxu0 %v416
    %548 = vmatprep.subr.bf16.mxu0 0
    %549 = vmatpush2.bf16.msra.mxu0 %v415
    %550 = vmatprep.subr.bf16.mxu0 0
    %551 = vmatpush2.bf16.msra.mxu0 %v414
    %552 = vmatprep.subr.bf16.mxu0 0
    %553 = vmatpush2.bf16.msra.mxu0 %v413
    %554 = vmatprep.subr.bf16.mxu0 0
    %555 = vmatpush2.bf16.msra.mxu0 %v412
    %556 = vmatprep.mubr.bf16.mxu0 %v90
    %557 = vmatmul.mubr.bf16.gmra.mxu0 %v89
    %v558 = vpop.f32.mrf.mxu0
    %v559 = vadd.f32 %v519, %v558
    %v560 = vpop.f32.mrf.mxu0
    %v561 = vpop.f32.mrf.mxu0
    %v562 = vpop.f32.mrf.mxu0
    %563 = vdwg.mxu0
    %564 = vmatprep.subr.bf16.mxu0 0
    %565 = vmatpush1.bf16.msra.mxu0 %v427
    %566 = vmatprep.subr.bf16.mxu0 0
    %567 = vmatpush1.bf16.msra.mxu0 %v426
    %568 = vmatprep.subr.bf16.mxu0 0
    %569 = vmatpush1.bf16.msra.mxu0 %v425
    %570 = vmatprep.subr.bf16.mxu0 0
    %571 = vmatpush1.bf16.msra.mxu0 %v424
    %572 = vmatprep.subr.bf16.mxu0 0
    %573 = vmatpush1.bf16.msra.mxu0 %v423
    %574 = vmatprep.subr.bf16.mxu0 0
    %575 = vmatpush1.bf16.msra.mxu0 %v422
    %576 = vmatprep.subr.bf16.mxu0 0
    %577 = vmatpush1.bf16.msra.mxu0 %v421
    %578 = vmatprep.subr.bf16.mxu0 0
    %579 = vmatpush1.bf16.msra.mxu0 %v420
    %580 = vmatprep.subr.bf16.mxu0 0
    %581 = vmatpush2.bf16.msra.mxu0 %v435
    %582 = vmatprep.subr.bf16.mxu0 0
    %583 = vmatpush2.bf16.msra.mxu0 %v434
    %584 = vmatprep.subr.bf16.mxu0 0
    %585 = vmatpush2.bf16.msra.mxu0 %v433
    %586 = vmatprep.subr.bf16.mxu0 0
    %587 = vmatpush2.bf16.msra.mxu0 %v432
    %588 = vmatprep.subr.bf16.mxu0 0
    %589 = vmatpush2.bf16.msra.mxu0 %v431
    %590 = vmatprep.subr.bf16.mxu0 0
    %591 = vmatpush2.bf16.msra.mxu0 %v430
    %592 = vmatprep.subr.bf16.mxu0 0
    %593 = vmatpush2.bf16.msra.mxu0 %v429
    %594 = vmatprep.subr.bf16.mxu0 0
    %595 = vmatpush2.bf16.msra.mxu0 %v428
    %596 = vmatprep.mubr.bf16.mxu0 %v92
    %597 = vmatmul.mubr.bf16.gmra.mxu0 %v91
    %v598 = vpop.f32.mrf.mxu0
    %v599 = vadd.f32 %v559, %v598
    %v600 = vpop.f32.mrf.mxu0
    %v601 = vpop.f32.mrf.mxu0
    %v602 = vpop.f32.mrf.mxu0
    %603 = vdwg.mxu0
    %v604 = vmax.f32 %v599, 0.0
    %v605 = vpack.c.bf16 %v604, %v604
    %v606 = vld [vmem:[#allocation7] sm:$0xf]
    %v607 = vld [vmem:[#allocation7 + $0x4] sm:$0xf]
    %v608 = vld [vmem:[#allocation7 + $0x8] sm:$0xf]
    %v609 = vld [vmem:[#allocation7 + $0xc] sm:$0xf]
    %v610 = vld [vmem:[#allocation7 + $0x10] sm:$0xf]
    %v611 = vld [vmem:[#allocation7 + $0x14] sm:$0xf]
    %v612 = vld [vmem:[#allocation7 + $0x18] sm:$0xf]
    %v613 = vld [vmem:[#allocation7 + $0x1c] sm:$0xf]
    %v614 = vld [vmem:[#allocation7 + $0x20] sm:$0xf]
    %v615 = vld [vmem:[#allocation7 + $0x24] sm:$0xf]
    %v616 = vld [vmem:[#allocation7 + $0x28] sm:$0xf]
    %v617 = vld [vmem:[#allocation7 + $0x2c] sm:$0xf]
    %v618 = vld [vmem:[#allocation7 + $0x30] sm:$0xf]
    %v619 = vld [vmem:[#allocation7 + $0x34] sm:$0xf]
    %v620 = vld [vmem:[#allocation7 + $0x38] sm:$0xf]
    %v621 = vld [vmem:[#allocation7 + $0x3c] sm:$0xf]
    %v622 = vld [vmem:[%s4] sm:$0x1]
    %v624 = vlaneseq
    %v625 = vshrl.u32 %v624, 7
    %v626 = vsub.s32 0, %v625
    %v627 = vrot.slane %v622, %v626
    %v645 = vunpack.c.l.b16 %v606
    %v646 = vunpack.c.l.b16 %v607
    %v647 = vunpack.c.l.b16 %v608
    %v648 = vunpack.c.l.b16 %v609
    %v649 = vunpack.c.l.b16 %v610
    %v650 = vunpack.c.l.b16 %v611
    %v651 = vunpack.c.l.b16 %v612
    %v652 = vunpack.c.l.b16 %v613
    %v653 = vunpack.c.l.b16 %v614
    %v654 = vunpack.c.l.b16 %v615
    %v655 = vunpack.c.l.b16 %v616
    %v656 = vunpack.c.l.b16 %v617
    %v657 = vunpack.c.l.b16 %v618
    %v658 = vunpack.c.l.b16 %v619
    %v659 = vunpack.c.l.b16 %v620
    %v660 = vunpack.c.l.b16 %v621
    %v661 = vpack.c.b16 %v646, %v645
    %v662 = vpack.c.b16 %v648, %v647
    %v663 = vpack.c.b16 %v650, %v649
    %v664 = vpack.c.b16 %v652, %v651
    %v665 = vpack.c.b16 %v654, %v653
    %v666 = vpack.c.b16 %v656, %v655
    %v667 = vpack.c.b16 %v658, %v657
    %v668 = vpack.c.b16 %v660, %v659
    %677 = vmatprep.subr.bf16.mxu0 0
    %678 = vmatpush1.bf16.msra.mxu0 %v668
    %679 = vmatprep.subr.bf16.mxu0 0
    %680 = vmatpush1.bf16.msra.mxu0 %v667
    %681 = vmatprep.subr.bf16.mxu0 0
    %682 = vmatpush1.bf16.msra.mxu0 %v666
    %683 = vmatprep.subr.bf16.mxu0 0
    %684 = vmatpush1.bf16.msra.mxu0 %v665
    %685 = vmatprep.subr.bf16.mxu0 0
    %686 = vmatpush1.bf16.msra.mxu0 %v664
    %687 = vmatprep.subr.bf16.mxu0 0
    %688 = vmatpush1.bf16.msra.mxu0 %v663
    %689 = vmatprep.subr.bf16.mxu0 0
    %690 = vmatpush1.bf16.msra.mxu0 %v662
    %691 = vmatprep.subr.bf16.mxu0 0
    %692 = vmatpush1.bf16.msra.mxu0 %v661
    %693 = vmatprep.subr.bf16.mxu0 0
    %694 = vmatpush2.bf16.msra.mxu0 0
    %695 = vmatprep.subr.bf16.mxu0 0
    %696 = vmatpush2.bf16.msra.mxu0 0
    %697 = vmatprep.subr.bf16.mxu0 0
    %698 = vmatpush2.bf16.msra.mxu0 0
    %699 = vmatprep.subr.bf16.mxu0 0
    %700 = vmatpush2.bf16.msra.mxu0 0
    %701 = vmatprep.subr.bf16.mxu0 0
    %702 = vmatpush2.bf16.msra.mxu0 0
    %703 = vmatprep.subr.bf16.mxu0 0
    %704 = vmatpush2.bf16.msra.mxu0 0
    %705 = vmatprep.subr.bf16.mxu0 0
    %706 = vmatpush2.bf16.msra.mxu0 0
    %707 = vmatprep.subr.bf16.mxu0 0
    %708 = vmatpush2.bf16.msra.mxu0 0
    %709 = vmatprep.mubr.bf16.mxu0 0
    %710 = vmatmul.mubr.bf16.gmra.mxu0 %v605
    %v711 = vpop.f32.mrf.mxu0
    %v712 = vadd.f32 %v627, %v711
    %v713 = vpop.f32.mrf.mxu0
    %v714 = vpop.f32.mrf.mxu0
    %v715 = vpop.f32.mrf.mxu0
    %716 = vdwg.mxu0
    %v717 = vmax.f32 %v712, 0.0
    %v718 = vpack.c.bf16 %v717, %v717
    %v719 = vld [vmem:[#allocation8] sm:$0xf]
    %v720 = vld [vmem:[#allocation8 + $0x4] sm:$0xf]
    %v721 = vld [vmem:[#allocation8 + $0x8] sm:$0xf]
    %v722 = vld [vmem:[#allocation8 + $0xc] sm:$0xf]
    %v723 = vld [vmem:[#allocation8 + $0x10] sm:$0xf]
    %v724 = vld [vmem:[#allocation8 + $0x14] sm:$0xf]
    %v725 = vld [vmem:[#allocation8 + $0x18] sm:$0xf]
    %v726 = vld [vmem:[#allocation8 + $0x1c] sm:$0xf]
    %v727 = vld [vmem:[#allocation8 + $0x20] sm:$0xf]
    %v728 = vld [vmem:[#allocation8 + $0x24] sm:$0xf]
    %v729 = vld [vmem:[#allocation8 + $0x28] sm:$0xf]
    %v730 = vld [vmem:[#allocation8 + $0x2c] sm:$0xf]
    %v731 = vld [vmem:[#allocation8 + $0x30] sm:$0xf]
    %v732 = vld [vmem:[#allocation8 + $0x34] sm:$0xf]
    %v733 = vld [vmem:[#allocation8 + $0x38] sm:$0xf]
    %v734 = vld [vmem:[#allocation8 + $0x3c] sm:$0xf]
    %v735 = vld [vmem:[%s6] sm:$0x1]
    %v737 = vlaneseq
    %v738 = vshrl.u32 %v737, 7
    %v739 = vsub.s32 0, %v738
    %v740 = vrot.slane %v735, %v739
    %v758 = vunpack.c.l.b16 %v719
    %v759 = vunpack.c.l.b16 %v720
    %v760 = vunpack.c.l.b16 %v721
    %v761 = vunpack.c.l.b16 %v722
    %v762 = vunpack.c.l.b16 %v723
    %v763 = vunpack.c.l.b16 %v724
    %v764 = vunpack.c.l.b16 %v725
    %v765 = vunpack.c.l.b16 %v726
    %v766 = vunpack.c.l.b16 %v727
    %v767 = vunpack.c.l.b16 %v728
    %v768 = vunpack.c.l.b16 %v729
    %v769 = vunpack.c.l.b16 %v730
    %v770 = vunpack.c.l.b16 %v731
    %v771 = vunpack.c.l.b16 %v732
    %v772 = vunpack.c.l.b16 %v733
    %v773 = vunpack.c.l.b16 %v734
    %v774 = vpack.c.b16 %v759, %v758
    %v775 = vpack.c.b16 %v761, %v760
    %v776 = vpack.c.b16 %v763, %v762
    %v777 = vpack.c.b16 %v765, %v764
    %v778 = vpack.c.b16 %v767, %v766
    %v779 = vpack.c.b16 %v769, %v768
    %v780 = vpack.c.b16 %v771, %v770
    %v781 = vpack.c.b16 %v773, %v772
    %790 = vmatprep.subr.bf16.mxu0 0
    %791 = vmatpush1.bf16.msra.mxu0 %v781
    %792 = vmatprep.subr.bf16.mxu0 0
    %793 = vmatpush1.bf16.msra.mxu0 %v780
    %794 = vmatprep.subr.bf16.mxu0 0
    %795 = vmatpush1.bf16.msra.mxu0 %v779
    %796 = vmatprep.subr.bf16.mxu0 0
    %797 = vmatpush1.bf16.msra.mxu0 %v778
    %798 = vmatprep.subr.bf16.mxu0 0
    %799 = vmatpush1.bf16.msra.mxu0 %v777
    %800 = vmatprep.subr.bf16.mxu0 0
    %801 = vmatpush1.bf16.msra.mxu0 %v776
    %802 = vmatprep.subr.bf16.mxu0 0
    %803 = vmatpush1.bf16.msra.mxu0 %v775
    %804 = vmatprep.subr.bf16.mxu0 0
    %805 = vmatpush1.bf16.msra.mxu0 %v774
    %806 = vmatprep.subr.bf16.mxu0 0
    %807 = vmatpush2.bf16.msra.mxu0 0
    %808 = vmatprep.subr.bf16.mxu0 0
    %809 = vmatpush2.bf16.msra.mxu0 0
    %810 = vmatprep.subr.bf16.mxu0 0
    %811 = vmatpush2.bf16.msra.mxu0 0
    %812 = vmatprep.subr.bf16.mxu0 0
    %813 = vmatpush2.bf16.msra.mxu0 0
    %814 = vmatprep.subr.bf16.mxu0 0
    %815 = vmatpush2.bf16.msra.mxu0 0
    %816 = vmatprep.subr.bf16.mxu0 0
    %817 = vmatpush2.bf16.msra.mxu0 0
    %818 = vmatprep.subr.bf16.mxu0 0
    %819 = vmatpush2.bf16.msra.mxu0 0
    %820 = vmatprep.subr.bf16.mxu0 0
    %821 = vmatpush2.bf16.msra.mxu0 0
    %822 = vmatprep.mubr.bf16.mxu0 0
    %823 = vmatmul.mubr.bf16.gmra.mxu0 %v718
    %v824 = vpop.f32.mrf.mxu0
    %v825 = vadd.f32 %v740, %v824
    %v826 = vpop.f32.mrf.mxu0
    %v827 = vpop.f32.mrf.mxu0
    %v828 = vpop.f32.mrf.mxu0
    %829 = vdwg.mxu0
    %v830 = vlaneseq
    %v831 = vand.u32 %v830, 127
    %vm832 = vcmp.lt.s32.totalorder %v831, 5
    %vm833 = vcmp.ge.s32.totalorder %v831, 10
    %vm834 = vmor %vm832, %vm833
    %v835 = vsel %vm834, -1e+11, %v825
    %836 = vst [vmem:[#allocation10] sm:$0xff] %v835
    // Predicated region
    $region46: #{tpu_custom_call.1} parent=1 // pred_check
      _
    $region47: #{tpu_custom_call.1} parent=1 // pred_check_branch
      %838 = sbr.rel (0) target = $region49
    $region48: #{tpu_custom_call.1} parent=1 // pred_region
      %s840 = ssub.s32 128, 128
      %841 = vsyncadd [#allocation4], %s840
      %s843 = sshll.u32 [#allocation10], 4
      %s844 = int_to_ptr.vmem [resolvable:$true] %s843
      %846 = dma.vmem_to_hbm [thread:$0]  %s844, 128, %s7, [#allocation4]
    $region49: #{tpu_custom_call.1} parent=1 // pred_fallthru
      _
    // Predicated region
    $region50: #{tpu_custom_call.1} parent=1 // pred_check
      _
    $region51: #{tpu_custom_call.1} parent=1 // pred_check_branch
      %848 = sbr.rel (0) target = $region53
    $region52: #{tpu_custom_call.1} parent=1 // pred_region
      %849 = dma.done [#allocation4], 128
    $region53: #{tpu_custom_call.1} parent=1 // pred_fallthru
      _
    %850 = vsyncpa [#allocation3], 1
    %851 = vsyncpa [#allocation6], 1
    %852 = vsyncpa [#allocation9], 1
    %853 = vsyncpa [#allocation4], 1

</llo_original>
